<compile_context>
chip_gen: v7x
topology: tpu7x:2x2x1
jax: 0.10.0
libtpu: 0.0.40
codegen_flags: <defaults>
</compile_context>

<pallas_src>
import jax
import jax.numpy as jnp
from jax.experimental import pallas as pl
from jax.experimental.pallas import tpu as pltpu

DIN = 100      # BatchNorm1d / GCN input feature dim
HID = 32       # GCN hidden / output dim
OUT = 3        # final output dim
OPAD = 128     # lane-dense padding of the 3-wide output dim
BN_EPS = 1e-5
NORM_EPS = 1e-12


# --------------------------------------------------------------------------
# Small helpers
# --------------------------------------------------------------------------
def _round_up(x, m):
    return ((x + m - 1) // m) * m


def _vmem_capacity_bytes():
    """Generation-aware VMEM capacity (128 MiB v5e/v6e, 64 MiB per-TC v7x)."""
    try:
        cap = getattr(pltpu.get_tpu_info(), "vmem_capacity_bytes", None)
        if cap:
            return int(cap)
    except Exception:
        pass
    return 64 << 20  # conservative fallback (v7x per-TensorCore)


def _choose_row_tile(n, budget_bytes, a_itemsize, max_tile=1024):
    """Pick a row tile for streaming (tm, N) blocks of A.

    Returns (tm, npad) with tm a multiple of 8 and tm | npad.  The tile is
    sized from the VMEM budget for a double-buffered A row block, prefers an
    exact divisor of n (so A never needs padding), and keeps >= 2 grid steps
    so the 'parallel' axis can be sharded across v7x's two TensorCores.
    """
    n8 = _round_up(n, 8)
    per_row = max(1, n8 * a_itemsize)
    fit = max(8, (budget_bytes // (2 * per_row) // 8) * 8)
    tm = min(max_tile, fit, n8)
    if n8 // tm < 2 and n8 >= 16:          # guarantee >= 2 tiles (megacore)
        tm = max(8, (n8 // 2 // 8) * 8)
    for cand in range(tm, 7, -8):          # prefer an exact divisor of n
        if n % cand == 0:
            return cand, n
    return tm, _round_up(n, tm)


# --------------------------------------------------------------------------
# Fused kernel (A resident in VMEM; A read from HBM exactly once).
# --------------------------------------------------------------------------
def _fused_kernel(x_ref, w1_ref, b1_ref, a_hbm_ref, wf_ref, bf_ref, o_ref,
                  a_vmem, dma_sem):
    # Kick off the (dominant) A DMA and hide the first projection under it.
    cp = pltpu.make_async_copy(a_hbm_ref, a_vmem, dma_sem)
    cp.start()
    h1 = (jnp.dot(x_ref[...], w1_ref[...], preferred_element_type=jnp.float32)
          + b1_ref[...]).astype(a_vmem.dtype)
    cp.wait()

    a = a_vmem[...]
    r = jnp.maximum(
        jnp.dot(a, h1, preferred_element_type=jnp.float32), 0.0
    ).astype(a_vmem.dtype)
    h2 = jnp.dot(a, r, preferred_element_type=jnp.float32)          # (N, 32)
    h = jnp.dot(h2, wf_ref[...], preferred_element_type=jnp.float32) + bf_ref[...]
    ssq = jnp.sum(h * h, axis=-1, keepdims=True)
    # F.normalize(x) == x * rsqrt(max(||x||^2, eps^2))
    o_ref[...] = h * jax.lax.rsqrt(jnp.maximum(ssq, NORM_EPS * NORM_EPS))


# --------------------------------------------------------------------------
# Streaming-path kernels (A row-tiled, streamed twice).
# --------------------------------------------------------------------------
def _project_kernel(x_ref, w1_ref, b1_ref, h1_ref):
    h1 = jnp.dot(x_ref[...], w1_ref[...], preferred_element_type=jnp.float32) + b1_ref[...]
    h1_ref[...] = h1.astype(h1_ref.dtype)


def _propagate_relu_kernel(a_ref, h1_ref, r_ref):
    acc = jnp.dot(a_ref[...], h1_ref[...], preferred_element_type=jnp.float32)
    r_ref[...] = jnp.maximum(acc, 0.0).astype(r_ref.dtype)


def _propagate_head_kernel(a_ref, r_ref, wf_ref, bf_ref, o_ref):
    h2 = jnp.dot(a_ref[...], r_ref[...], preferred_element_type=jnp.float32)
    h = jnp.dot(h2, wf_ref[...], preferred_element_type=jnp.float32) + bf_ref[...]
    ssq = jnp.sum(h * h, axis=-1, keepdims=True)
    o_ref[...] = (h * jax.lax.rsqrt(jnp.maximum(ssq, NORM_EPS * NORM_EPS))
                  ).astype(o_ref.dtype)


# --------------------------------------------------------------------------
# Wrapper
# --------------------------------------------------------------------------
def semantic_gcn_forward(legislation_rep, adj_matrix, params, *, force_streaming=False):
    f32 = jnp.float32
    N, din = legislation_rep.shape
    assert din == DIN and adj_matrix.shape == (N, N)

    # A is used in whatever dtype the caller provides (pass bf16 A once at the
    # boundary to halve HBM traffic on the only O(N^2) tensor; no wrapper cast).
    a = adj_matrix
    a_item = jnp.dtype(a.dtype).itemsize
    h_dtype = jnp.bfloat16 if jnp.dtype(a.dtype) == jnp.dtype(jnp.bfloat16) else f32

    x = legislation_rep.astype(f32)

    # --- BatchNorm (training-mode batch stats) folded into the first projection.
    # Stats are O(N*100) -> plain XLA, hoisted out of the row-tiled kernels.
    mean = jnp.mean(x, axis=0)
    var = jnp.mean((x - mean[None, :]) ** 2, axis=0)          # biased, like torch BN
    scale = params["bn_gamma"].astype(f32) * jax.lax.rsqrt(var + BN_EPS)
    shift = params["bn_beta"].astype(f32) - mean * scale
    w1t = params["gcn_w1"].T.astype(f32)                      # (100, 32)
    w1_eff = scale[:, None] * w1t                              # BN scale folded in
    b1_eff = shift[None, :] @ w1t                              # (1, 32)

    # --- Fold W2 -> mlp1 -> mlp2 (no nonlinearity between) into (32,3) + bias,
    # zero-padded to 128 lanes for unmasked, lane-dense output stores.
    w_fold = (params["gcn_w2"].T @ params["mlp1_w"].T @ params["mlp2_w"].T).astype(f32)
    b_fold = (params["mlp1_b"][None, :].astype(f32) @ params["mlp2_w"].T.astype(f32)
              + params["mlp2_b"][None, :].astype(f32))
    wf = jnp.zeros((HID, OPAD), f32).at[:, :OUT].set(w_fold)
    bf = jnp.zeros((1, OPAD), f32).at[0, :OUT].set(b_fold[0])

    cap = _vmem_capacity_bytes()
    usable = max(cap - (12 << 20), 16 << 20)

    # Conservative fused-path working set: 1 A scratch copy + headroom for the
    # materialized A value in the two propagations + x / out / intermediates.
    fused_ws = ((9 * N * N * a_item) // 4 + 2 * N * DIN * 4
                + 2 * N * OPAD * 4 + N * 1024 + (1 << 20))

    if not force_streaming and fused_ws <= usable:
        # ---------- fused path: A kept resident, read from HBM exactly once ----------
        out_pad = pl.pallas_call(
            _fused_kernel,
            out_shape=jax.ShapeDtypeStruct((N, OPAD), f32),
            grid=(1,),
            in_specs=[
                pl.BlockSpec((N, DIN), lambda i: (0, 0)),
                pl.BlockSpec((DIN, HID), lambda i: (0, 0)),
                pl.BlockSpec((1, HID), lambda i: (0, 0)),
                pl.BlockSpec(memory_space=pl.ANY),        # A stays in HBM; manual DMA
                pl.BlockSpec((HID, OPAD), lambda i: (0, 0)),
                pl.BlockSpec((1, OPAD), lambda i: (0, 0)),
            ],
            out_specs=pl.BlockSpec((N, OPAD), lambda i: (0, 0)),
            scratch_shapes=[pltpu.VMEM((N, N), a.dtype),
                            pltpu.SemaphoreType.DMA(())],
            compiler_params=pltpu.CompilerParams(
                dimension_semantics=("arbitrary",),
                vmem_limit_bytes=int(min(fused_ws + (8 << 20), cap - (2 << 20)))),
        )(x, w1_eff, b1_eff, a, wf, bf)
        return out_pad[:, :OUT]

    # ---------- streaming path: A row-tiled (VMEM-budget-derived tile), streamed twice ----------
    h_item = jnp.dtype(h_dtype).itemsize
    resident = 2 * _round_up(N, 8) * HID * h_item + (4 << 20)
    budget = max(usable - resident, 8 << 20)
    tm, npad = _choose_row_tile(N, budget, a_item)

    if npad != N:
        # TODO(synk): this pads A in XLA (one O(N^2) copy) when N has no usable
        # multiple-of-8 divisor; pre-pad A at the caller if this path is hot.
        a = jnp.pad(a, ((0, npad - N), (0, npad - N)))
        x = jnp.pad(x, ((0, npad - N), (0, 0)))
    num_tiles = npad // tm
    cap_limit = cap - (2 << 20)

    # stage 1: h1 = x @ W1_eff + b1_eff   (row-tiled, tiny traffic)
    ws1 = 2 * (tm * DIN * 4 + DIN * HID * 4 + HID * 4 + tm * HID * h_item)
    h1 = pl.pallas_call(
        _project_kernel,
        out_shape=jax.ShapeDtypeStruct((npad, HID), h_dtype),
        grid=(num_tiles,),
        in_specs=[
            pl.BlockSpec((tm, DIN), lambda i: (i, 0)),
            pl.BlockSpec((DIN, HID), lambda i: (0, 0)),
            pl.BlockSpec((1, HID), lambda i: (0, 0)),
        ],
        out_specs=pl.BlockSpec((tm, HID), lambda i: (i, 0)),
        compiler_params=pltpu.CompilerParams(
            dimension_semantics=("parallel",),
            vmem_limit_bytes=int(min(max(2 * ws1, 4 << 20), cap_limit))),
    )(x, w1_eff, b1_eff)

    # stage 2: r = relu(A @ h1)
    ws2 = 2 * (tm * npad * a_item) + 2 * (npad * HID * h_item) + 2 * (tm * HID * h_item)
    r = pl.pallas_call(
        _propagate_relu_kernel,
        out_shape=jax.ShapeDtypeStruct((npad, HID), h_dtype),
        grid=(num_tiles,),
        in_specs=[
            pl.BlockSpec((tm, npad), lambda i: (i, 0)),
            pl.BlockSpec((npad, HID), lambda i: (0, 0)),
        ],
        out_specs=pl.BlockSpec((tm, HID), lambda i: (i, 0)),
        compiler_params=pltpu.CompilerParams(
            dimension_semantics=("parallel",),
            vmem_limit_bytes=int(min(ws2 + (4 << 20), cap_limit))),
    )(a, h1)

    # stage 3: out = normalize((A @ r) @ W_fold + b_fold)
    ws3 = (2 * (tm * npad * a_item) + 2 * (npad * HID * h_item)
           + 2 * (HID * OPAD * 4 + OPAD * 4) + 2 * (tm * OPAD * 4))
    out_pad = pl.pallas_call(
        _propagate_head_kernel,
        out_shape=jax.ShapeDtypeStruct((npad, OPAD), f32),
        grid=(num_tiles,),
        in_specs=[
            pl.BlockSpec((tm, npad), lambda i: (i, 0)),
            pl.BlockSpec((npad, HID), lambda i: (0, 0)),
            pl.BlockSpec((HID, OPAD), lambda i: (0, 0)),
            pl.BlockSpec((1, OPAD), lambda i: (0, 0)),
        ],
        out_specs=pl.BlockSpec((tm, OPAD), lambda i: (i, 0)),
        compiler_params=pltpu.CompilerParams(
            dimension_semantics=("parallel",),
            vmem_limit_bytes=int(min(ws3 + (4 << 20), cap_limit))),
    )(a, r, wf, bf)

    return out_pad[:N, :OUT]


# --------------------------------------------------------------------------
# Synthetic parameters + pure-JAX references
# --------------------------------------------------------------------------
def init_params(key):
    ks = jax.random.split(key, 6)
    return {
        "bn_gamma": jnp.ones((100,), jnp.float32),
        "bn_beta": jnp.zeros((100,), jnp.float32),
        "gcn_w1": jax.random.normal(ks[0], (32, 100), jnp.float32) * 0.1,   # Linear(100,32)
        "gcn_w2": jax.random.normal(ks[1], (32, 32), jnp.float32) * 0.1,    # Linear(32,32)
        "mlp1_w": jax.random.normal(ks[2], (16, 32), jnp.float32) * 0.1,    # Linear(32,16)
        "mlp1_b": jax.random.normal(ks[3], (16,), jnp.float32) * 0.1,
        "mlp2_w": jax.random.normal(ks[4], (3, 16), jnp.float32) * 0.1,     # Linear(16,3)
        "mlp2_b": jax.random.normal(ks[5], (3,), jnp.float32) * 0.1,
    }


def reference_forward(legislation_rep, adj_matrix, params):
    """Pure-f32 reference mirroring the PyTorch module (training-mode BN)."""
    x = legislation_rep
    mean = jnp.mean(x, axis=0, keepdims=True)
    var = jnp.mean((x - mean) ** 2, axis=0, keepdims=True)
    x = (x - mean) / jnp.sqrt(var + BN_EPS)
    x = x * params["bn_gamma"][None, :] + params["bn_beta"][None, :]
    a = adj_matrix.astype(jnp.float32)
    x = jax.nn.relu((a @ x) @ params["gcn_w1"].T)
    x = (a @ x) @ params["gcn_w2"].T
    x = x @ params["mlp1_w"].T + params["mlp1_b"]
    x = x @ params["mlp2_w"].T + params["mlp2_b"]
    norm = jnp.sqrt(jnp.sum(x * x, axis=1, keepdims=True))
    return x / jnp.maximum(norm, NORM_EPS)


def reference_forward_matched(legislation_rep, adj_bf16, params):
    """Reference with the same bf16 quantization points as the kernel (A, h1, r)."""
    f32 = jnp.float32
    x = legislation_rep
    mean = jnp.mean(x, axis=0, keepdims=True)
    var = jnp.mean((x - mean) ** 2, axis=0, keepdims=True)
    x = (x - mean) / jnp.sqrt(var + BN_EPS)
    x = x * params["bn_gamma"][None, :] + params["bn_beta"][None, :]
    a = adj_bf16.astype(f32)
    h1 = (x @ params["gcn_w1"].T).astype(jnp.bfloat16).astype(f32)
    r = jax.nn.relu(a @ h1).astype(jnp.bfloat16).astype(f32)
    h = (a @ r) @ params["gcn_w2"].T
    h = h @ params["mlp1_w"].T + params["mlp1_b"]
    h = h @ params["mlp2_w"].T + params["mlp2_b"]
    norm = jnp.sqrt(jnp.sum(h * h, axis=1, keepdims=True))
    return h / jnp.maximum(norm, NORM_EPS)


if __name__ == "__main__":
    key = jax.random.PRNGKey(0)
    k_in, k_adj, k_par = jax.random.split(key, 3)

    N = 80  # number of graph nodes (BatchNorm1d batch); small demo size
    legislation_rep = jax.random.normal(k_in, (N, DIN), jnp.float32)
    # Symmetric row-normalized adjacency with self loops.
    raw = jax.random.uniform(k_adj, (N, N), jnp.float32)
    adj = (raw + raw.T) * 0.5 + jnp.eye(N, dtype=jnp.float32)
    adj = adj / jnp.sum(adj, axis=1, keepdims=True)

    params = init_params(k_par)

    # Cast A to bf16 ONCE at the call boundary; the kernels never re-cast the
    # only O(N^2) tensor (per the perf feedback).
    adj_bf16 = adj.astype(jnp.bfloat16)

    # Exercise both paths: fused A-resident (default for small graphs) and the
    # row-tiled streaming path used when A does not fit in VMEM.
    out_fused = jax.block_until_ready(
        semantic_gcn_forward(legislation_rep, adj_bf16, params))
    out_stream = jax.block_until_ready(
        semantic_gcn_forward(legislation_rep, adj_bf16, params, force_streaming=True))
    assert out_fused.shape == (N, OUT) and out_stream.shape == (N, OUT)

    with jax.default_matmul_precision("float32"):
        ref_match = reference_forward_matched(legislation_rep, adj_bf16, params)
        ref_f32 = reference_forward(legislation_rep, adj, params)

    for out in (out_fused, out_stream):
        assert jnp.allclose(out, ref_match, atol=1e-2, rtol=1e-2), \
            "mismatch vs matched-precision reference"
        assert jnp.allclose(out, ref_f32, atol=5e-2, rtol=5e-2), \
            "mismatch vs f32 reference"

    print("KERNEL_OK")
</pallas_src>

<mosaic_0001>
module attributes {stable_mosaic.version = 11 : i64} {
  func.func @_fused_kernel(%arg0: i32, %arg1: memref<80x100xf32, #tpu.memory_space<vmem>>, %arg2: memref<100x32xf32, #tpu.memory_space<vmem>>, %arg3: memref<1x32xf32, #tpu.memory_space<vmem>>, %arg4: memref<80x80xbf16, #tpu.memory_space<any>>, %arg5: memref<32x128xf32, #tpu.memory_space<vmem>>, %arg6: memref<1x128xf32, #tpu.memory_space<vmem>>, %arg7: memref<80x128xf32, #tpu.memory_space<vmem>>, %arg8: memref<80x80xbf16, #tpu.memory_space<vmem>>, %arg9: memref<!tpu.dma_semaphore, #tpu.memory_space<semaphore_mem>>) attributes {dimension_semantics = [#tpu.dimension_semantics<arbitrary>], iteration_bounds = array<i64: 1>, scalar_prefetch = 0 : i64, scratch_operands = 2 : i64, tpu.core_type = #tpu.core_type<tc>, window_params = [{pipeline_mode = #tpu.pipeline_mode<synchronous>, transform_indices = @transform_0, window_bounds = array<i64: 80, 100>}, {pipeline_mode = #tpu.pipeline_mode<synchronous>, transform_indices = @transform_1, window_bounds = array<i64: 100, 32>}, {pipeline_mode = #tpu.pipeline_mode<synchronous>, transform_indices = @transform_2, window_bounds = array<i64: 1, 32>}, {}, {pipeline_mode = #tpu.pipeline_mode<synchronous>, transform_indices = @transform_4, window_bounds = array<i64: 32, 128>}, {pipeline_mode = #tpu.pipeline_mode<synchronous>, transform_indices = @transform_5, window_bounds = array<i64: 1, 128>}, {pipeline_mode = #tpu.pipeline_mode<synchronous>, transform_indices = @transform_6, window_bounds = array<i64: 80, 128>}]} {
    tpu.enqueue_dma source(%arg4 : memref<80x80xbf16, #tpu.memory_space<any>>) target(%arg8 : memref<80x80xbf16, #tpu.memory_space<vmem>>) target_semaphore(%arg9 : memref<!tpu.dma_semaphore, #tpu.memory_space<semaphore_mem>>)
    %c0 = arith.constant 0 : index
    %c0_0 = arith.constant 0 : index
    %0 = vector.load %arg1[%c0, %c0_0] : memref<80x100xf32, #tpu.memory_space<vmem>>, vector<80x100xf32>
    %c0_1 = arith.constant 0 : index
    %c0_2 = arith.constant 0 : index
    %1 = vector.load %arg2[%c0_1, %c0_2] : memref<100x32xf32, #tpu.memory_space<vmem>>, vector<100x32xf32>
    %cst = arith.constant dense<0.000000e+00> : vector<80x32xf32>
    %2 = tpu.matmul %0, %1, %cst {dimension_numbers = #tpu.dot_dimension_numbers<[1], [0], [0], [1], [0, 0, 1, 1], [], []>} : vector<80x100xf32>, vector<100x32xf32>, vector<80x32xf32> -> vector<80x32xf32>
    %c0_3 = arith.constant 0 : index
    %c0_4 = arith.constant 0 : index
    %3 = vector.load %arg3[%c0_3, %c0_4] : memref<1x32xf32, #tpu.memory_space<vmem>>, vector<1x32xf32>
    %4 = vector.broadcast %3 : vector<1x32xf32> to vector<80x32xf32>
    %5 = arith.addf %2, %4 : vector<80x32xf32>
    %6 = arith.truncf %5 : vector<80x32xf32> to vector<80x32xbf16>
    tpu.wait_dma2 semaphore(%arg9 : memref<!tpu.dma_semaphore, #tpu.memory_space<semaphore_mem>>) src(%arg4 : memref<80x80xbf16, #tpu.memory_space<any>>) dst(%arg8 : memref<80x80xbf16, #tpu.memory_space<vmem>>)
    %c0_5 = arith.constant 0 : index
    %c0_6 = arith.constant 0 : index
    %7 = vector.load %arg8[%c0_5, %c0_6] : memref<80x80xbf16, #tpu.memory_space<vmem>>, vector<80x80xbf16>
    %cst_7 = arith.constant dense<0.000000e+00> : vector<80x32xf32>
    %8 = tpu.matmul %7, %6, %cst_7 {dimension_numbers = #tpu.dot_dimension_numbers<[1], [0], [0], [1], [0, 0, 1, 1], [], []>} : vector<80x80xbf16>, vector<80x32xbf16>, vector<80x32xf32> -> vector<80x32xf32>
    %cst_8 = arith.constant 0.000000e+00 : f32
    %9 = vector.broadcast %cst_8 : f32 to vector<80x32xf32>
    %10 = arith.maximumf %8, %9 : vector<80x32xf32>
    %11 = arith.truncf %10 : vector<80x32xf32> to vector<80x32xbf16>
    %cst_9 = arith.constant dense<0.000000e+00> : vector<80x32xf32>
    %12 = tpu.matmul %7, %11, %cst_9 {dimension_numbers = #tpu.dot_dimension_numbers<[1], [0], [0], [1], [0, 0, 1, 1], [], []>} : vector<80x80xbf16>, vector<80x32xbf16>, vector<80x32xf32> -> vector<80x32xf32>
    %c0_10 = arith.constant 0 : index
    %c0_11 = arith.constant 0 : index
    %13 = vector.load %arg5[%c0_10, %c0_11] : memref<32x128xf32, #tpu.memory_space<vmem>>, vector<32x128xf32>
    %cst_12 = arith.constant dense<0.000000e+00> : vector<80x128xf32>
    %14 = tpu.matmul %12, %13, %cst_12 {dimension_numbers = #tpu.dot_dimension_numbers<[1], [0], [0], [1], [0, 0, 1, 1], [], []>} : vector<80x32xf32>, vector<32x128xf32>, vector<80x128xf32> -> vector<80x128xf32>
    %c0_13 = arith.constant 0 : index
    %c0_14 = arith.constant 0 : index
    %15 = vector.load %arg6[%c0_13, %c0_14] : memref<1x128xf32, #tpu.memory_space<vmem>>, vector<1x128xf32>
    %16 = vector.broadcast %15 : vector<1x128xf32> to vector<80x128xf32>
    %17 = arith.addf %14, %16 : vector<80x128xf32>
    %18 = arith.mulf %17, %17 : vector<80x128xf32>
    %cst_15 = arith.constant dense<0.000000e+00> : vector<80xf32>
    %19 = vector.multi_reduction <add>, %18, %cst_15 [1] : vector<80x128xf32> to vector<80xf32>
    %20 = vector.shape_cast %19 : vector<80xf32> to vector<80x1xf32>
    %cst_16 = arith.constant 1.000000e-24 : f32
    %21 = vector.broadcast %cst_16 : f32 to vector<80x1xf32>
    %22 = arith.maximumf %20, %21 : vector<80x1xf32>
    %23 = math.rsqrt %22 : vector<80x1xf32>
    %24 = vector.broadcast %23 : vector<80x1xf32> to vector<80x128xf32>
    %25 = arith.mulf %17, %24 : vector<80x128xf32>
    %c0_17 = arith.constant 0 : index
    %c0_18 = arith.constant 0 : index
    %26 = vector.load %arg7[%c0_17, %c0_18] : memref<80x128xf32, #tpu.memory_space<vmem>>, vector<80x128xf32>
    tpu.vector_store %arg7[%c0_17, %c0_18], %25 {strides = array<i32>} : memref<80x128xf32, #tpu.memory_space<vmem>>, vector<80x128xf32>,
    return
  }
  func.func @transform_0(%arg0: i32) -> (i32, i32) {
    %c0_i32 = arith.constant 0 : i32
    %c0_i32_0 = arith.constant 0 : i32
    %c0_i32_1 = arith.constant 0 : i32
    return %c0_i32, %c0_i32_0 : i32, i32
  }
  func.func @transform_1(%arg0: i32) -> (i32, i32) {
    %c0_i32 = arith.constant 0 : i32
    %c0_i32_0 = arith.constant 0 : i32
    %c0_i32_1 = arith.constant 0 : i32
    return %c0_i32, %c0_i32_0 : i32, i32
  }
  func.func @transform_2(%arg0: i32) -> (i32, i32) {
    %c0_i32 = arith.constant 0 : i32
    %c0_i32_0 = arith.constant 0 : i32
    %c0_i32_1 = arith.constant 0 : i32
    return %c0_i32, %c0_i32_0 : i32, i32
  }
  func.func @transform_4(%arg0: i32) -> (i32, i32) {
    %c0_i32 = arith.constant 0 : i32
    %c0_i32_0 = arith.constant 0 : i32
    %c0_i32_1 = arith.constant 0 : i32
    return %c0_i32, %c0_i32_0 : i32, i32
  }
  func.func @transform_5(%arg0: i32) -> (i32, i32) {
    %c0_i32 = arith.constant 0 : i32
    %c0_i32_0 = arith.constant 0 : i32
    %c0_i32_1 = arith.constant 0 : i32
    return %c0_i32, %c0_i32_0 : i32, i32
  }
  func.func @transform_6(%arg0: i32) -> (i32, i32) {
    %c0_i32 = arith.constant 0 : i32
    %c0_i32_0 = arith.constant 0 : i32
    %c0_i32_1 = arith.constant 0 : i32
    return %c0_i32, %c0_i32_0 : i32, i32
  }
}

</mosaic_0001>

<llo_original>
// kernel: tpu_custom_call.1
$region0: #{tpu_custom_call.1}
  #allocation0 [shape = 'u32[]', space=smem, size = 0x4, offset = 0x4, fixed_abs, tag = 'smem constant byte address 0x4 - core index']
  #allocation1 [shape = 'u32[144,128]{1,0:T(1,128)}', space=vmem, size = 0x12000, scoped, tag = 'internal scratch']
  #allocation2 [shape = 'bf16[80,80]{1,0:T(16,128)(2,1)}', space=vmem, size = 0x5000, scoped, tag = 'scratch operand']
  #allocation3 [shape = 's32[1]{0}', space=sflag, size = 0x4, scoped, tag = 'scratch operand']
  #allocation8 [shape = 's32[]', space=sflag, size = 0x4, offset = 0, fixed_abs, tag = 'sflag constant byte address 0x0 - dummy sync flag']
  %s0 = inlined_call_operand.vmem [shape: f32[80,100], index: 0, kind: input, shape index: {}]
  %s1 = inlined_call_operand.vmem [shape: f32[100,32], index: 1, kind: input, shape index: {}]
  %s2 = inlined_call_operand.vmem [shape: f32[1,32], index: 2, kind: input, shape index: {}]
  %s3 = inlined_call_operand.vmem [shape: bf16[80,80], index: 3, kind: input, shape index: {}]
  %s4 = inlined_call_operand.hbm [shape: f32[32,128], index: 4, kind: input, shape index: {}]
  %s5 = inlined_call_operand.vmem [shape: f32[1,128], index: 5, kind: input, shape index: {}]
  %s6 = inlined_call_operand.hbm [shape: f32[80,128], index: 6, kind: output, shape index: {}]
  %s7 = sld [smem:[#allocation0]]
  $region68: #{tpu_custom_call.1} parent=0
    _
  %s9 = ssub.s32 1, %s7
  %s10 = scalar_select 0, %s9, %s7
  $region1: #{tpu_custom_call.1} parent=0
    #allocation4 [shape = 'u8[16384]{0}', space=vmem, size = 0x4000, scoped, tag = 'input window, operand 4, single buffered']
    #allocation5 [shape = 's32[1]{0}', space=sflag, size = 0x4, scoped, tag = 'scoped memory for tpu_custom_call.1']
    #allocation6 [shape = 's32[1]{0}', space=sflag, size = 0x4, scoped, tag = 'scoped memory for tpu_custom_call.1']
    #allocation7 [shape = 'u8[40960]{0}', space=vmem, size = 0xa000, scoped, tag = 'output window, operand 0, single buffered']
    %11 = vsyncpa [#allocation5], 0
    %12 = vsyncpa [#allocation6], 0
    // Predicated region
    $region2: #{tpu_custom_call.1} parent=1 // pred_check
      _
    $region3: #{tpu_custom_call.1} parent=1 // pred_check_branch
      %14 = sbr.rel (0) target = $region5
    $region4: #{tpu_custom_call.1} parent=1 // pred_region
      _
    $region5: #{tpu_custom_call.1} parent=1 // pred_fallthru
      _
    // Predicated region
    $region6: #{tpu_custom_call.1} parent=1 // pred_check
      _
    $region7: #{tpu_custom_call.1} parent=1 // pred_check_branch
      %16 = sbr.rel (0) target = $region9
    $region8: #{tpu_custom_call.1} parent=1 // pred_region
      _
    $region9: #{tpu_custom_call.1} parent=1 // pred_fallthru
      _
    // Predicated region
    $region10: #{tpu_custom_call.1} parent=1 // pred_check
      _
    $region11: #{tpu_custom_call.1} parent=1 // pred_check_branch
      %18 = sbr.rel (0) target = $region13
    $region12: #{tpu_custom_call.1} parent=1 // pred_region
      _
    $region13: #{tpu_custom_call.1} parent=1 // pred_fallthru
      _
    // Predicated region
    $region14: #{tpu_custom_call.1} parent=1 // pred_check
      _
    $region15: #{tpu_custom_call.1} parent=1 // pred_check_branch
      %20 = sbr.rel (0) target = $region17
    $region16: #{tpu_custom_call.1} parent=1 // pred_region
      %s22 = ssub.s32 512, 512
      %23 = vsyncadd [#allocation5], %s22
      %s24 = sshll.u32 [#allocation4], 4
      %s25 = int_to_ptr.vmem [resolvable:$true] %s24
      %30 = dma.hbm_to_vmem [thread:$0]  %s4, 512, %s25, [#allocation5], 128, 128, 8
    $region17: #{tpu_custom_call.1} parent=1 // pred_fallthru
      _
    // Predicated region
    $region18: #{tpu_custom_call.1} parent=1 // pred_check
      _
    $region19: #{tpu_custom_call.1} parent=1 // pred_check_branch
      %32 = sbr.rel (0) target = $region21
    $region20: #{tpu_custom_call.1} parent=1 // pred_region
      _
    $region21: #{tpu_custom_call.1} parent=1 // pred_fallthru
      _
    // Predicated region
    $region22: #{tpu_custom_call.1} parent=1 // pred_check
      _
    $region23: #{tpu_custom_call.1} parent=1 // pred_check_branch
      %34 = sbr.rel (0) target = $region25
    $region24: #{tpu_custom_call.1} parent=1 // pred_region
      %35 = dma.done [#allocation5], 512
    $region25: #{tpu_custom_call.1} parent=1 // pred_fallthru
      _
    %p38 = scmp.lt.u32.totalorder 40, 8
    %p39 = pneg %p38
    // Predicated region
    $region26: #{tpu_custom_call.1} parent=1 // pred_check
      _
    $region27: #{tpu_custom_call.1} parent=1 // pred_check_branch
      %41 = sbr.rel (%p38) target = $region29
    $region28: #{tpu_custom_call.1} parent=1 // pred_region
      %s56 = sand.u32 40, 7
      %p57 = scmp.eq.s32.totalorder %s56, 0
      // Predicated region
      $region41: #{tpu_custom_call.1} parent=28 // pred_check
        %p58 = pneg %p57
      $region42: #{tpu_custom_call.1} parent=28 // pred_check_branch
        %60 = sbr.rel (%p58) target = $region44
      $region43: #{tpu_custom_call.1} parent=28 // pred_region
        loop: start=0, step=1, limit=1
        $region45: #{tpu_custom_call.1} parent=43 // loop_pre_header
          _
        $region46: #{tpu_custom_call.1} parent=43 // loop_header
          %s62 = sphi 0, %s66
          %p63 = scmp.ge.s32.totalorder %s62, 1
          %s67 = sphi %s3, %s3
          %s68 = sphi [#allocation2], [#allocation2]
        $region47: #{tpu_custom_call.1} parent=43 // loop_header_branch
          %65 = sbr.rel (%p63) target = $region51
        $region48: #{tpu_custom_call.1} parent=43 // loop_body
          %v69 = vld [vmem:[%s67] sm:$0xff]
          %70 = vst [vmem:[%s68] sm:$0xff] %v69
          %v71 = vld [vmem:[%s67 + $0x8] sm:$0xff]
          %72 = vst [vmem:[%s68 + $0x8] sm:$0xff] %v71
          %v73 = vld [vmem:[%s67 + $0x10] sm:$0xff]
          %74 = vst [vmem:[%s68 + $0x10] sm:$0xff] %v73
          %v75 = vld [vmem:[%s67 + $0x18] sm:$0xff]
          %76 = vst [vmem:[%s68 + $0x18] sm:$0xff] %v75
          %v77 = vld [vmem:[%s67 + $0x20] sm:$0xff]
          %78 = vst [vmem:[%s68 + $0x20] sm:$0xff] %v77
        $region49: #{tpu_custom_call.1} parent=43 // loop_footer
          %s66 = sadd.s32 1, %s62
        $region50: #{tpu_custom_call.1} parent=43 // loop_footer_branch
          %61 = sbr.rel target = $region46
        $region51: #{tpu_custom_call.1} parent=43 // loop_exit
          _
      $region44: #{tpu_custom_call.1} parent=28 // pred_fallthru
        _
      %p79 = pneg %p57
      // Predicated region
      $region52: #{tpu_custom_call.1} parent=28 // pred_check
        _
      $region53: #{tpu_custom_call.1} parent=28 // pred_check_branch
        %81 = sbr.rel (%p57) target = $region55
      $region54: #{tpu_custom_call.1} parent=28 // pred_region
        %s82 = sand.u32 40, 7
      $region55: #{tpu_custom_call.1} parent=28 // pred_fallthru
        _
    $region29: #{tpu_custom_call.1} parent=1 // pred_fallthru
      _
    // Predicated region
    $region30: #{tpu_custom_call.1} parent=1 // pred_check
      %p42 = pneg %p38
    $region31: #{tpu_custom_call.1} parent=1 // pred_check_branch
      %44 = sbr.rel (%p42) target = $region33
    $region32: #{tpu_custom_call.1} parent=1 // pred_region
      %s45 = sshllo.u32 0, 40
      loop: start=0, step=1, limit=1
      $region34: #{tpu_custom_call.1} parent=32 // loop_pre_header
        _
      $region35: #{tpu_custom_call.1} parent=32 // loop_header
        %s47 = sphi 0, %s51
        %p48 = scmp.ge.s32.totalorder %s47, 1
        %s52 = sphi %s3, %s3
        %s53 = sphi [#allocation2], [#allocation2]
      $region36: #{tpu_custom_call.1} parent=32 // loop_header_branch
        %50 = sbr.rel (%p48) target = $region40
      $region37: #{tpu_custom_call.1} parent=32 // loop_body
        %v54 = vld [vmem:[%s52] sm:%s45]
        %55 = vst [vmem:[%s53] sm:%s45] %v54
      $region38: #{tpu_custom_call.1} parent=32 // loop_footer
        %s51 = sadd.s32 1, %s47
      $region39: #{tpu_custom_call.1} parent=32 // loop_footer_branch
        %46 = sbr.rel target = $region35
      $region40: #{tpu_custom_call.1} parent=32 // loop_exit
        _
    $region33: #{tpu_custom_call.1} parent=1 // pred_fallthru
      _
    // Predicated region
    $region56: #{tpu_custom_call.1} parent=1 // pred_check
      _
    $region57: #{tpu_custom_call.1} parent=1 // pred_check_branch
      %85 = sbr.rel (0) target = $region59
    $region58: #{tpu_custom_call.1} parent=1 // pred_region
      %86 = vsyncadd [#allocation3], 640
    $region59: #{tpu_custom_call.1} parent=1 // pred_fallthru
      _
    %v87 = vld [vmem:[%s0] sm:$0xff]
    %v88 = vld [vmem:[%s0 + $0x8] sm:$0xff]
    %v89 = vld [vmem:[%s0 + $0x10] sm:$0xff]
    %v90 = vld [vmem:[%s0 + $0x18] sm:$0xff]
    %v91 = vld [vmem:[%s0 + $0x20] sm:$0xff]
    %v92 = vld [vmem:[%s0 + $0x28] sm:$0xff]
    %v93 = vld [vmem:[%s0 + $0x30] sm:$0xff]
    %v94 = vld [vmem:[%s0 + $0x38] sm:$0xff]
    %v95 = vld [vmem:[%s0 + $0x40] sm:$0xff]
    %v96 = vld [vmem:[%s0 + $0x48] sm:$0xff]
    %v97 = vld [vmem:[%s1] sm:$0xff]
    %v98 = vld [vmem:[%s1 + $0x8] sm:$0xff]
    %v99 = vld [vmem:[%s1 + $0x10] sm:$0xff]
    %v100 = vld [vmem:[%s1 + $0x18] sm:$0xff]
    %v101 = vld [vmem:[%s1 + $0x20] sm:$0xff]
    %v102 = vld [vmem:[%s1 + $0x28] sm:$0xff]
    %v103 = vld [vmem:[%s1 + $0x30] sm:$0xff]
    %v104 = vld [vmem:[%s1 + $0x38] sm:$0xff]
    %v105 = vld [vmem:[%s1 + $0x40] sm:$0xff]
    %v106 = vld [vmem:[%s1 + $0x48] sm:$0xff]
    %v107 = vld [vmem:[%s1 + $0x50] sm:$0xff]
    %v108 = vld [vmem:[%s1 + $0x58] sm:$0xff]
    %v109 = vld [vmem:[%s1 + $0x60] sm:$0xf]
    %v110 = vld [vmem:[%s2] sm:$0x1]
    %v112 = vlaneseq
    %v113 = vshrl.u32 %v112, 7
    %v114 = vsub.s32 0, %v113
    %v115 = vrot.slane %v110, %v114
    %vm117 = vcmask 818176
    %v119 = vsel %vm117, %v87, 0
    %v122 = vsel %vm117, %v88, 0
    %v125 = vsel %vm117, %v89, 0
    %v128 = vsel %vm117, %v90, 0
    %v131 = vsel %vm117, %v91, 0
    %v134 = vsel %vm117, %v92, 0
    %v137 = vsel %vm117, %v93, 0
    %v140 = vsel %vm117, %v94, 0
    %v143 = vsel %vm117, %v95, 0
    %v146 = vsel %vm117, %v96, 0
    %vm148 = vcmask 1043456
    %v150 = vsel %vm148, %v109, 0
    %152 = vmatprep.subr.mxu0 0.0
    %153 = vmatpush1.msra.mxu0 %v97
    %154 = vmatprep.subr.mxu0 0.0
    %155 = vmatpush1.msra.mxu0 %v98
    %156 = vmatprep.subr.mxu0 0.0
    %157 = vmatpush1.msra.mxu0 %v99
    %158 = vmatprep.subr.mxu0 0.0
    %159 = vmatpush1.msra.mxu0 %v100
    %160 = vmatprep.subr.mxu0 0.0
    %161 = vmatpush1.msra.mxu0 %v101
    %162 = vmatprep.subr.mxu0 0.0
    %163 = vmatpush1.msra.mxu0 %v102
    %164 = vmatprep.subr.mxu0 0.0
    %165 = vmatpush1.msra.mxu0 %v103
    %166 = vmatprep.subr.mxu0 0.0
    %167 = vmatpush1.msra.mxu0 %v104
    %168 = vmatprep.subr.mxu0 0.0
    %169 = vmatpush1.msra.mxu0 %v105
    %170 = vmatprep.subr.mxu0 0.0
    %171 = vmatpush1.msra.mxu0 %v106
    %172 = vmatprep.subr.mxu0 0.0
    %173 = vmatpush1.msra.mxu0 %v107
    %174 = vmatprep.subr.mxu0 0.0
    %175 = vmatpush1.msra.mxu0 %v108
    %176 = vmatprep.subr.mxu0 0.0
    %177 = vmatpush1.msra.mxu0 %v150
    %178 = vmatprep.subr.mxu0 0.0
    %179 = vmatpush1.msra.mxu0 0.0
    %180 = vmatprep.subr.mxu0 0.0
    %181 = vmatpush1.msra.mxu0 0.0
    %182 = vmatprep.subr.mxu0 0.0
    %183 = vmatpush1.msra.mxu0 0.0
    %184 = vmatprep.subr.mxu0 0.0
    %185 = vmatpush1.msra.mxu0 0.0
    %186 = vmatprep.subr.mxu0 0.0
    %187 = vmatpush1.msra.mxu0 0.0
    %188 = vmatprep.subr.mxu0 0.0
    %189 = vmatpush1.msra.mxu0 0.0
    %190 = vmatprep.subr.mxu0 0.0
    %191 = vmatpush1.msra.mxu0 0.0
    %192 = vmatprep.subr.mxu0 0.0
    %193 = vmatpush1.msra.mxu0 0.0
    %194 = vmatprep.subr.mxu0 0.0
    %195 = vmatpush1.msra.mxu0 0.0
    %196 = vmatprep.subr.mxu0 0.0
    %197 = vmatpush1.msra.mxu0 0.0
    %198 = vmatprep.subr.mxu0 0.0
    %199 = vmatpush1.msra.mxu0 0.0
    %200 = vmatprep.subr.mxu0 0.0
    %201 = vmatpush1.msra.mxu0 0.0
    %202 = vmatprep.subr.mxu0 0.0
    %203 = vmatpush1.msra.mxu0 0.0
    %204 = vmatprep.subr.mxu0 0.0
    %205 = vmatpush1.msra.mxu0 0.0
    %206 = vmatprep.subr.mxu0 0.0
    %207 = vmatpush1.msra.mxu0 0.0
    %208 = vmatprep.subr.mxu0 0.0
    %209 = vmatpush1.msra.mxu0 0.0
    %210 = vmatprep.subr.mxu0 0.0
    %211 = vmatpush1.msra.mxu0 0.0
    %212 = vmatprep.subr.mxu0 0.0
    %213 = vmatpush1.msra.mxu0 0.0
    %214 = vmatprep.subr.mxu0 0.0
    %215 = vmatpush1.msra.mxu0 0.0
    %216 = vmatprep.mubr.f32.mxu0 0.0
    %217 = vmatmul.mubr.f32.gmra.mrb[0].mxu0 %v119
    %v218 = vpop.f32.mrb[0].mxu0
    %v219 = vadd.f32 %v115, %v218
    %v220 = vpop.f32.mrb[0].mxu0
    %221 = vmatprep.mubr.f32.mxu0 0.0
    %222 = vmatmul.mubr.f32.gmra.mrb[0].mxu0 %v122
    %v223 = vpop.f32.mrb[0].mxu0
    %v224 = vadd.f32 %v115, %v223
    %v225 = vpop.f32.mrb[0].mxu0
    %226 = vmatprep.mubr.f32.mxu0 0.0
    %227 = vmatmul.mubr.f32.gmra.mrb[0].mxu0 %v125
    %v228 = vpop.f32.mrb[0].mxu0
    %v229 = vadd.f32 %v115, %v228
    %v230 = vpop.f32.mrb[0].mxu0
    %231 = vmatprep.mubr.f32.mxu0 0.0
    %232 = vmatmul.mubr.f32.gmra.mrb[0].mxu0 %v128
    %v233 = vpop.f32.mrb[0].mxu0
    %v234 = vadd.f32 %v115, %v233
    %v235 = vpop.f32.mrb[0].mxu0
    %236 = vmatprep.mubr.f32.mxu0 0.0
    %237 = vmatmul.mubr.f32.gmra.mrb[0].mxu0 %v131
    %v238 = vpop.f32.mrb[0].mxu0
    %v239 = vadd.f32 %v115, %v238
    %v240 = vpop.f32.mrb[0].mxu0
    %241 = vmatprep.mubr.f32.mxu0 0.0
    %242 = vmatmul.mubr.f32.gmra.mrb[0].mxu0 %v134
    %v243 = vpop.f32.mrb[0].mxu0
    %v244 = vadd.f32 %v115, %v243
    %v245 = vpop.f32.mrb[0].mxu0
    %246 = vmatprep.mubr.f32.mxu0 0.0
    %247 = vmatmul.mubr.f32.gmra.mrb[0].mxu0 %v137
    %v248 = vpop.f32.mrb[0].mxu0
    %v249 = vadd.f32 %v115, %v248
    %v250 = vpop.f32.mrb[0].mxu0
    %251 = vmatprep.mubr.f32.mxu0 0.0
    %252 = vmatmul.mubr.f32.gmra.mrb[0].mxu0 %v140
    %v253 = vpop.f32.mrb[0].mxu0
    %v254 = vadd.f32 %v115, %v253
    %v255 = vpop.f32.mrb[0].mxu0
    %256 = vmatprep.mubr.f32.mxu0 0.0
    %257 = vmatmul.mubr.f32.gmra.mrb[0].mxu0 %v143
    %v258 = vpop.f32.mrb[0].mxu0
    %v259 = vadd.f32 %v115, %v258
    %v260 = vpop.f32.mrb[0].mxu0
    %261 = vmatprep.mubr.f32.mxu0 0.0
    %262 = vmatmul.mubr.f32.gmra.mrb[0].mxu0 %v146
    %v263 = vpop.f32.mrb[0].mxu0
    %v264 = vadd.f32 %v115, %v263
    %v265 = vpop.f32.mrb[0].mxu0
    %266 = vdwg.mxu0
    %v267 = vpack.c.bf16 %v224, %v219
    %v268 = vpack.c.bf16 %v234, %v229
    %v269 = vpack.c.bf16 %v244, %v239
    %v270 = vpack.c.bf16 %v254, %v249
    %v271 = vpack.c.bf16 %v264, %v259
    %s272 = smul.u32 4, 10
    %s273 = smul.u32 %s272, 1
    %s274 = sshll.u32 %s273, 4
    %275 = dma.done [#allocation3], %s274
    %v276 = vld [vmem:[#allocation2] sm:$0xff]
    %v277 = vld [vmem:[#allocation2 + $0x8] sm:$0xff]
    %v278 = vld [vmem:[#allocation2 + $0x10] sm:$0xff]
    %v279 = vld [vmem:[#allocation2 + $0x18] sm:$0xff]
    %v280 = vld [vmem:[#allocation2 + $0x20] sm:$0xff]
    %vm281 = vcmask 654336
    %v283 = vsel %vm281, %v276, 0
    %v286 = vsel %vm281, %v277, 0
    %v289 = vsel %vm281, %v278, 0
    %v292 = vsel %vm281, %v279, 0
    %v295 = vsel %vm281, %v280, 0
    %297 = vmatprep.subr.bf16.mxu0 0
    %298 = vmatpush1.bf16.msra.mxu0 %v267
    %299 = vmatprep.subr.bf16.mxu0 0
    %300 = vmatpush1.bf16.msra.mxu0 %v268
    %301 = vmatprep.subr.bf16.mxu0 0
    %302 = vmatpush1.bf16.msra.mxu0 %v269
    %303 = vmatprep.subr.bf16.mxu0 0
    %304 = vmatpush1.bf16.msra.mxu0 %v270
    %305 = vmatprep.subr.bf16.mxu0 0
    %306 = vmatpush1.bf16.msra.mxu0 %v271
    %307 = vmatprep.subr.bf16.mxu0 0
    %308 = vmatpush1.bf16.msra.mxu0 0
    %309 = vmatprep.subr.bf16.mxu0 0
    %310 = vmatpush1.bf16.msra.mxu0 0
    %311 = vmatprep.subr.bf16.mxu0 0
    %312 = vmatpush1.bf16.msra.mxu0 0
    %313 = vmatprep.subr.bf16.mxu0 0
    %314 = vmatpush1.bf16.msra.mxu0 0
    %315 = vmatprep.subr.bf16.mxu0 0
    %316 = vmatpush1.bf16.msra.mxu0 0
    %317 = vmatprep.subr.bf16.mxu0 0
    %318 = vmatpush1.bf16.msra.mxu0 0
    %319 = vmatprep.subr.bf16.mxu0 0
    %320 = vmatpush1.bf16.msra.mxu0 0
    %321 = vmatprep.subr.bf16.mxu0 0
    %322 = vmatpush1.bf16.msra.mxu0 0
    %323 = vmatprep.subr.bf16.mxu0 0
    %324 = vmatpush1.bf16.msra.mxu0 0
    %325 = vmatprep.subr.bf16.mxu0 0
    %326 = vmatpush1.bf16.msra.mxu0 0
    %327 = vmatprep.subr.bf16.mxu0 0
    %328 = vmatpush1.bf16.msra.mxu0 0
    %329 = vmatprep.mubr.bf16.mxu0 0
    %330 = vmatmul.mubr.bf16.gmra.mrb[0].mxu0 %v283
    %v331 = vpop.f32.mrb[0].mxu0
    %v332 = vadd.f32 0.0, %v331
    %v333 = vpop.f32.mrb[0].mxu0
    %v334 = vpop.f32.mrb[0].mxu0
    %v335 = vadd.f32 0.0, %v334
    %v336 = vpop.f32.mrb[0].mxu0
    %337 = vmatprep.mubr.bf16.mxu0 0
    %338 = vmatmul.mubr.bf16.gmra.mrb[0].mxu0 %v286
    %v339 = vpop.f32.mrb[0].mxu0
    %v340 = vadd.f32 0.0, %v339
    %v341 = vpop.f32.mrb[0].mxu0
    %v342 = vpop.f32.mrb[0].mxu0
    %v343 = vadd.f32 0.0, %v342
    %v344 = vpop.f32.mrb[0].mxu0
    %345 = vmatprep.mubr.bf16.mxu0 0
    %346 = vmatmul.mubr.bf16.gmra.mrb[0].mxu0 %v289
    %v347 = vpop.f32.mrb[0].mxu0
    %v348 = vadd.f32 0.0, %v347
    %v349 = vpop.f32.mrb[0].mxu0
    %v350 = vpop.f32.mrb[0].mxu0
    %v351 = vadd.f32 0.0, %v350
    %v352 = vpop.f32.mrb[0].mxu0
    %353 = vmatprep.mubr.bf16.mxu0 0
    %354 = vmatmul.mubr.bf16.gmra.mrb[0].mxu0 %v292
    %v355 = vpop.f32.mrb[0].mxu0
    %v356 = vadd.f32 0.0, %v355
    %v357 = vpop.f32.mrb[0].mxu0
    %v358 = vpop.f32.mrb[0].mxu0
    %v359 = vadd.f32 0.0, %v358
    %v360 = vpop.f32.mrb[0].mxu0
    %361 = vmatprep.mubr.bf16.mxu0 0
    %362 = vmatmul.mubr.bf16.gmra.mrb[0].mxu0 %v295
    %v363 = vpop.f32.mrb[0].mxu0
    %v364 = vadd.f32 0.0, %v363
    %v365 = vpop.f32.mrb[0].mxu0
    %v366 = vpop.f32.mrb[0].mxu0
    %v367 = vadd.f32 0.0, %v366
    %v368 = vpop.f32.mrb[0].mxu0
    %369 = vdwg.mxu0
    %v370 = vmax.f32 %v332, 0.0
    %v371 = vmax.f32 %v335, 0.0
    %v372 = vmax.f32 %v340, 0.0
    %v373 = vmax.f32 %v343, 0.0
    %v374 = vmax.f32 %v348, 0.0
    %v375 = vmax.f32 %v351, 0.0
    %v376 = vmax.f32 %v356, 0.0
    %v377 = vmax.f32 %v359, 0.0
    %v378 = vmax.f32 %v364, 0.0
    %v379 = vmax.f32 %v367, 0.0
    %v380 = vpack.c.bf16 %v371, %v370
    %v381 = vpack.c.bf16 %v373, %v372
    %v382 = vpack.c.bf16 %v375, %v374
    %v383 = vpack.c.bf16 %v377, %v376
    %v384 = vpack.c.bf16 %v379, %v378
    %385 = vmatprep.subr.bf16.mxu0 0
    %386 = vmatpush1.bf16.msra.mxu0 %v380
    %387 = vmatprep.subr.bf16.mxu0 0
    %388 = vmatpush1.bf16.msra.mxu0 %v381
    %389 = vmatprep.subr.bf16.mxu0 0
    %390 = vmatpush1.bf16.msra.mxu0 %v382
    %391 = vmatprep.subr.bf16.mxu0 0
    %392 = vmatpush1.bf16.msra.mxu0 %v383
    %393 = vmatprep.subr.bf16.mxu0 0
    %394 = vmatpush1.bf16.msra.mxu0 %v384
    %395 = vmatprep.subr.bf16.mxu0 0
    %396 = vmatpush1.bf16.msra.mxu0 0
    %397 = vmatprep.subr.bf16.mxu0 0
    %398 = vmatpush1.bf16.msra.mxu0 0
    %399 = vmatprep.subr.bf16.mxu0 0
    %400 = vmatpush1.bf16.msra.mxu0 0
    %401 = vmatprep.subr.bf16.mxu0 0
    %402 = vmatpush1.bf16.msra.mxu0 0
    %403 = vmatprep.subr.bf16.mxu0 0
    %404 = vmatpush1.bf16.msra.mxu0 0
    %405 = vmatprep.subr.bf16.mxu0 0
    %406 = vmatpush1.bf16.msra.mxu0 0
    %407 = vmatprep.subr.bf16.mxu0 0
    %408 = vmatpush1.bf16.msra.mxu0 0
    %409 = vmatprep.subr.bf16.mxu0 0
    %410 = vmatpush1.bf16.msra.mxu0 0
    %411 = vmatprep.subr.bf16.mxu0 0
    %412 = vmatpush1.bf16.msra.mxu0 0
    %413 = vmatprep.subr.bf16.mxu0 0
    %414 = vmatpush1.bf16.msra.mxu0 0
    %415 = vmatprep.subr.bf16.mxu0 0
    %416 = vmatpush1.bf16.msra.mxu0 0
    %417 = vmatprep.mubr.bf16.mxu0 0
    %418 = vmatmul.mubr.bf16.gmra.mrb[0].mxu0 %v283
    %v419 = vpop.f32.mrb[0].mxu0
    %v420 = vadd.f32 0.0, %v419
    %v421 = vpop.f32.mrb[0].mxu0
    %v422 = vpop.f32.mrb[0].mxu0
    %v423 = vadd.f32 0.0, %v422
    %v424 = vpop.f32.mrb[0].mxu0
    %425 = vmatprep.mubr.bf16.mxu0 0
    %426 = vmatmul.mubr.bf16.gmra.mrb[0].mxu0 %v286
    %v427 = vpop.f32.mrb[0].mxu0
    %v428 = vadd.f32 0.0, %v427
    %v429 = vpop.f32.mrb[0].mxu0
    %v430 = vpop.f32.mrb[0].mxu0
    %v431 = vadd.f32 0.0, %v430
    %v432 = vpop.f32.mrb[0].mxu0
    %433 = vmatprep.mubr.bf16.mxu0 0
    %434 = vmatmul.mubr.bf16.gmra.mrb[0].mxu0 %v289
    %v435 = vpop.f32.mrb[0].mxu0
    %v436 = vadd.f32 0.0, %v435
    %v437 = vpop.f32.mrb[0].mxu0
    %v438 = vpop.f32.mrb[0].mxu0
    %v439 = vadd.f32 0.0, %v438
    %v440 = vpop.f32.mrb[0].mxu0
    %441 = vmatprep.mubr.bf16.mxu0 0
    %442 = vmatmul.mubr.bf16.gmra.mrb[0].mxu0 %v292
    %v443 = vpop.f32.mrb[0].mxu0
    %v444 = vadd.f32 0.0, %v443
    %v445 = vpop.f32.mrb[0].mxu0
    %v446 = vpop.f32.mrb[0].mxu0
    %v447 = vadd.f32 0.0, %v446
    %v448 = vpop.f32.mrb[0].mxu0
    %449 = vmatprep.mubr.bf16.mxu0 0
    %450 = vmatmul.mubr.bf16.gmra.mrb[0].mxu0 %v295
    %v451 = vpop.f32.mrb[0].mxu0
    %v452 = vadd.f32 0.0, %v451
    %v453 = vpop.f32.mrb[0].mxu0
    %v454 = vpop.f32.mrb[0].mxu0
    %v455 = vadd.f32 0.0, %v454
    %v456 = vpop.f32.mrb[0].mxu0
    %457 = vdwg.mxu0
    %v458 = vld [vmem:[#allocation4] sm:$0xff]
    %v459 = vld [vmem:[#allocation4 + $0x8] sm:$0xff]
    %v460 = vld [vmem:[#allocation4 + $0x10] sm:$0xff]
    %v461 = vld [vmem:[#allocation4 + $0x18] sm:$0xff]
    %v462 = vld [vmem:[%s5] sm:$0x1]
    %v464 = vlaneseq
    %v465 = vshrl.u32 %v464, 7
    %v466 = vsub.s32 0, %v465
    %v467 = vrot.slane %v462, %v466
    %vm469 = vcmask 261120
    %v471 = vsel %vm469, %v420, 0
    %v474 = vsel %vm469, %v423, 0
    %v477 = vsel %vm469, %v428, 0
    %v480 = vsel %vm469, %v431, 0
    %v483 = vsel %vm469, %v436, 0
    %v486 = vsel %vm469, %v439, 0
    %v489 = vsel %vm469, %v444, 0
    %v492 = vsel %vm469, %v447, 0
    %v495 = vsel %vm469, %v452, 0
    %v498 = vsel %vm469, %v455, 0
    %500 = vmatprep.subr.mxu0 0.0
    %501 = vmatpush1.msra.mxu0 %v458
    %502 = vmatprep.subr.mxu0 0.0
    %503 = vmatpush1.msra.mxu0 %v459
    %504 = vmatprep.subr.mxu0 0.0
    %505 = vmatpush1.msra.mxu0 %v460
    %506 = vmatprep.subr.mxu0 0.0
    %507 = vmatpush1.msra.mxu0 %v461
    %508 = vmatprep.subr.mxu0 0.0
    %509 = vmatpush1.msra.mxu0 0.0
    %510 = vmatprep.subr.mxu0 0.0
    %511 = vmatpush1.msra.mxu0 0.0
    %512 = vmatprep.subr.mxu0 0.0
    %513 = vmatpush1.msra.mxu0 0.0
    %514 = vmatprep.subr.mxu0 0.0
    %515 = vmatpush1.msra.mxu0 0.0
    %516 = vmatprep.subr.mxu0 0.0
    %517 = vmatpush1.msra.mxu0 0.0
    %518 = vmatprep.subr.mxu0 0.0
    %519 = vmatpush1.msra.mxu0 0.0
    %520 = vmatprep.subr.mxu0 0.0
    %521 = vmatpush1.msra.mxu0 0.0
    %522 = vmatprep.subr.mxu0 0.0
    %523 = vmatpush1.msra.mxu0 0.0
    %524 = vmatprep.subr.mxu0 0.0
    %525 = vmatpush1.msra.mxu0 0.0
    %526 = vmatprep.subr.mxu0 0.0
    %527 = vmatpush1.msra.mxu0 0.0
    %528 = vmatprep.subr.mxu0 0.0
    %529 = vmatpush1.msra.mxu0 0.0
    %530 = vmatprep.subr.mxu0 0.0
    %531 = vmatpush1.msra.mxu0 0.0
    %532 = vmatprep.subr.mxu0 0.0
    %533 = vmatpush1.msra.mxu0 0.0
    %534 = vmatprep.subr.mxu0 0.0
    %535 = vmatpush1.msra.mxu0 0.0
    %536 = vmatprep.subr.mxu0 0.0
    %537 = vmatpush1.msra.mxu0 0.0
    %538 = vmatprep.subr.mxu0 0.0
    %539 = vmatpush1.msra.mxu0 0.0
    %540 = vmatprep.subr.mxu0 0.0
    %541 = vmatpush1.msra.mxu0 0.0
    %542 = vmatprep.subr.mxu0 0.0
    %543 = vmatpush1.msra.mxu0 0.0
    %544 = vmatprep.subr.mxu0 0.0
    %545 = vmatpush1.msra.mxu0 0.0
    %546 = vmatprep.subr.mxu0 0.0
    %547 = vmatpush1.msra.mxu0 0.0
    %548 = vmatprep.subr.mxu0 0.0
    %549 = vmatpush1.msra.mxu0 0.0
    %550 = vmatprep.subr.mxu0 0.0
    %551 = vmatpush1.msra.mxu0 0.0
    %552 = vmatprep.subr.mxu0 0.0
    %553 = vmatpush1.msra.mxu0 0.0
    %554 = vmatprep.subr.mxu0 0.0
    %555 = vmatpush1.msra.mxu0 0.0
    %556 = vmatprep.subr.mxu0 0.0
    %557 = vmatpush1.msra.mxu0 0.0
    %558 = vmatprep.subr.mxu0 0.0
    %559 = vmatpush1.msra.mxu0 0.0
    %560 = vmatprep.subr.mxu0 0.0
    %561 = vmatpush1.msra.mxu0 0.0
    %562 = vmatprep.subr.mxu0 0.0
    %563 = vmatpush1.msra.mxu0 0.0
    %564 = vmatprep.mubr.f32.mxu0 0.0
    %565 = vmatmul.mubr.f32.gmra.mrb[0].mxu0 %v471
    %v566 = vpop.f32.mrb[0].mxu0
    %v567 = vadd.f32 %v467, %v566
    %v568 = vpop.f32.mrb[0].mxu0
    %569 = vmatprep.mubr.f32.mxu0 0.0
    %570 = vmatmul.mubr.f32.gmra.mrb[0].mxu0 %v474
    %v571 = vpop.f32.mrb[0].mxu0
    %v572 = vadd.f32 %v467, %v571
    %v573 = vpop.f32.mrb[0].mxu0
    %574 = vmatprep.mubr.f32.mxu0 0.0
    %575 = vmatmul.mubr.f32.gmra.mrb[0].mxu0 %v477
    %v576 = vpop.f32.mrb[0].mxu0
    %v577 = vadd.f32 %v467, %v576
    %v578 = vpop.f32.mrb[0].mxu0
    %579 = vmatprep.mubr.f32.mxu0 0.0
    %580 = vmatmul.mubr.f32.gmra.mrb[0].mxu0 %v480
    %v581 = vpop.f32.mrb[0].mxu0
    %v582 = vadd.f32 %v467, %v581
    %v583 = vpop.f32.mrb[0].mxu0
    %584 = vmatprep.mubr.f32.mxu0 0.0
    %585 = vmatmul.mubr.f32.gmra.mrb[0].mxu0 %v483
    %v586 = vpop.f32.mrb[0].mxu0
    %v587 = vadd.f32 %v467, %v586
    %v588 = vpop.f32.mrb[0].mxu0
    %589 = vmatprep.mubr.f32.mxu0 0.0
    %590 = vmatmul.mubr.f32.gmra.mrb[0].mxu0 %v486
    %v591 = vpop.f32.mrb[0].mxu0
    %v592 = vadd.f32 %v467, %v591
    %v593 = vpop.f32.mrb[0].mxu0
    %594 = vmatprep.mubr.f32.mxu0 0.0
    %595 = vmatmul.mubr.f32.gmra.mrb[0].mxu0 %v489
    %v596 = vpop.f32.mrb[0].mxu0
    %v597 = vadd.f32 %v467, %v596
    %v598 = vpop.f32.mrb[0].mxu0
    %599 = vmatprep.mubr.f32.mxu0 0.0
    %600 = vmatmul.mubr.f32.gmra.mrb[0].mxu0 %v492
    %v601 = vpop.f32.mrb[0].mxu0
    %v602 = vadd.f32 %v467, %v601
    %v603 = vpop.f32.mrb[0].mxu0
    %604 = vmatprep.mubr.f32.mxu0 0.0
    %605 = vmatmul.mubr.f32.gmra.mrb[0].mxu0 %v495
    %v606 = vpop.f32.mrb[0].mxu0
    %v607 = vadd.f32 %v467, %v606
    %v608 = vpop.f32.mrb[0].mxu0
    %609 = vmatprep.mubr.f32.mxu0 0.0
    %610 = vmatmul.mubr.f32.gmra.mrb[0].mxu0 %v498
    %v611 = vpop.f32.mrb[0].mxu0
    %v612 = vadd.f32 %v467, %v611
    %v613 = vpop.f32.mrb[0].mxu0
    %614 = vdwg.mxu0
    %v615 = vmul.f32 %v567, %v567
    %v616 = vmul.f32 %v572, %v572
    %v617 = vmul.f32 %v577, %v577
    %v618 = vmul.f32 %v582, %v582
    %v619 = vmul.f32 %v587, %v587
    %v620 = vmul.f32 %v592, %v592
    %v621 = vmul.f32 %v597, %v597
    %v622 = vmul.f32 %v602, %v602
    %v623 = vmul.f32 %v607, %v607
    %v624 = vmul.f32 %v612, %v612
    %625 = vadd.xlane.f32.xlu0 %v615
    %v626 = vpop.xlane.xlu0 %625
    %627 = vadd.xlane.f32.xlu0 %v616
    %v628 = vpop.xlane.xlu0 %627
    %629 = vadd.xlane.f32.xlu0 %v617
    %v630 = vpop.xlane.xlu0 %629
    %631 = vadd.xlane.f32.xlu0 %v618
    %v632 = vpop.xlane.xlu0 %631
    %633 = vadd.xlane.f32.xlu0 %v619
    %v634 = vpop.xlane.xlu0 %633
    %635 = vadd.xlane.f32.xlu0 %v620
    %v636 = vpop.xlane.xlu0 %635
    %637 = vadd.xlane.f32.xlu0 %v621
    %v638 = vpop.xlane.xlu0 %637
    %639 = vadd.xlane.f32.xlu0 %v622
    %v640 = vpop.xlane.xlu0 %639
    %641 = vadd.xlane.f32.xlu0 %v623
    %v642 = vpop.xlane.xlu0 %641
    %643 = vadd.xlane.f32.xlu0 %v624
    %v644 = vpop.xlane.xlu0 %643
    %v645 = vmax.f32 %v626, 1e-24
    %v646 = vmax.f32 %v628, 1e-24
    %v647 = vmax.f32 %v630, 1e-24
    %v648 = vmax.f32 %v632, 1e-24
    %v649 = vmax.f32 %v634, 1e-24
    %v650 = vmax.f32 %v636, 1e-24
    %v651 = vmax.f32 %v638, 1e-24
    %v652 = vmax.f32 %v640, 1e-24
    %v653 = vmax.f32 %v642, 1e-24
    %v654 = vmax.f32 %v644, 1e-24
    %v655 = vrsqrt.pop %v645
    %v656 = vrsqrt.pop %v646
    %v657 = vrsqrt.pop %v647
    %v658 = vrsqrt.pop %v648
    %v659 = vrsqrt.pop %v649
    %v660 = vrsqrt.pop %v650
    %v661 = vrsqrt.pop %v651
    %v662 = vrsqrt.pop %v652
    %v663 = vrsqrt.pop %v653
    %v664 = vrsqrt.pop %v654
    %v665 = vmul.f32 %v567, %v655
    %v666 = vmul.f32 %v572, %v656
    %v667 = vmul.f32 %v577, %v657
    %v668 = vmul.f32 %v582, %v658
    %v669 = vmul.f32 %v587, %v659
    %v670 = vmul.f32 %v592, %v660
    %v671 = vmul.f32 %v597, %v661
    %v672 = vmul.f32 %v602, %v662
    %v673 = vmul.f32 %v607, %v663
    %v674 = vmul.f32 %v612, %v664
    %675 = vst [vmem:[#allocation7] sm:$0xff] %v665
    %676 = vst [vmem:[#allocation7 + $0x8] sm:$0xff] %v666
    %677 = vst [vmem:[#allocation7 + $0x10] sm:$0xff] %v667
    %678 = vst [vmem:[#allocation7 + $0x18] sm:$0xff] %v668
    %679 = vst [vmem:[#allocation7 + $0x20] sm:$0xff] %v669
    %680 = vst [vmem:[#allocation7 + $0x28] sm:$0xff] %v670
    %681 = vst [vmem:[#allocation7 + $0x30] sm:$0xff] %v671
    %682 = vst [vmem:[#allocation7 + $0x38] sm:$0xff] %v672
    %683 = vst [vmem:[#allocation7 + $0x40] sm:$0xff] %v673
    %684 = vst [vmem:[#allocation7 + $0x48] sm:$0xff] %v674
    // Predicated region
    $region60: #{tpu_custom_call.1} parent=1 // pred_check
      _
    $region61: #{tpu_custom_call.1} parent=1 // pred_check_branch
      %686 = sbr.rel (0) target = $region63
    $region62: #{tpu_custom_call.1} parent=1 // pred_region
      %s688 = ssub.s32 1280, 1280
      %689 = vsyncadd [#allocation6], %s688
      %s690 = sshll.u32 [#allocation7], 4
      %s691 = int_to_ptr.vmem [resolvable:$true] %s690
      %696 = dma.vmem_to_hbm [thread:$0]  %s691, 1280, %s6, [#allocation6], 128, 128, 8
    $region63: #{tpu_custom_call.1} parent=1 // pred_fallthru
      _
    // Predicated region
    $region64: #{tpu_custom_call.1} parent=1 // pred_check
      _
    $region65: #{tpu_custom_call.1} parent=1 // pred_check_branch
      %698 = sbr.rel (0) target = $region67
    $region66: #{tpu_custom_call.1} parent=1 // pred_region
      %699 = dma.done [#allocation6], 1280
    $region67: #{tpu_custom_call.1} parent=1 // pred_fallthru
      _
    %700 = vsyncpa [#allocation5], 1
    %701 = vsyncpa [#allocation6], 1
  %702 = vsyncmov [#allocation3]
  %s703 = vpop.sfrf %702
  %p704 = scmp.eq.s32.totalorder %s703, 0
  %p705 = pneg %p704
  %707 = shalt.err (%p705)

</llo_original>
